<compile_context>
chip_gen: v5e
topology: v5e:2x2
jax: 0.10.0
libtpu: 0.0.40
codegen_flags: <defaults>
</compile_context>

<pallas_src>
import functools

import jax
import jax.numpy as jnp
from jax.experimental import pallas as pl
from jax.experimental.pallas import tpu as pltpu


_LANES = 128
_SUBLANES = 8


def _focal_bce_kernel(x_ref, y_ref, out_ref, acc_ref, *, alpha, gamma, s0, s1):
    """Processes one (3, TR, 128) block; accumulates weighted partial sums."""
    step = pl.program_id(0)

    @pl.when(step == 0)
    def _init():
        acc_ref[...] = jnp.zeros_like(acc_ref)

    x = x_ref[...]                       # (3, TR, 128) f32 logits
    y = y_ref[...]                       # (3, TR, 128) f32 labels

    # Numerically-stable BCE with logits (PyTorch formula):
    #   max(x, 0) - x*y + log(1 + exp(-|x|))
    e = jnp.exp(-jnp.abs(x))             # single EUP exp, reused for sigmoid
    ce = jnp.maximum(x, 0.0) - x * y + jnp.log1p(e)

    # --- channel 0: plain BCEWithLogitsLoss, pre-scaled by w0 / N ---
    c0 = ce[0] * s0                      # (TR, 128)

    # --- channels 1,2: torchvision sigmoid_focal_loss, pre-scaled by w1/(2N) ---
    xf, yf, ef, cef = x[1:3], y[1:3], e[1:3], ce[1:3]
    r = 1.0 / (1.0 + ef)                 # sigmoid from the already-computed exp
    p = jnp.where(xf >= 0.0, r, ef * r)
    p_t = p * yf + (1.0 - p) * (1.0 - yf)
    one_m = 1.0 - p_t
    if gamma == 2.0:                     # avoid pow's log+exp on the EUP
        mod = one_m * one_m
    else:
        mod = jnp.power(one_m, gamma)
    fl = cef * mod
    if alpha >= 0.0:
        fl = (alpha * yf + (1.0 - alpha) * (1.0 - yf)) * fl
    cf = (fl[0] + fl[1]) * s1            # (TR, 128)

    # steady state: pure VPU adds into the vector accumulator
    acc_ref[...] += c0 + cf

    @pl.when(step == pl.num_programs(0) - 1)
    def _finalize():
        out_ref[0, 0] = jnp.sum(acc_ref[...])   # one XLU reduce, once


def focal_bce_loss(logits, labels, masks=None, *, alpha=0.25, gamma=2.0,
                   weight=(1.0, 1.0), block_rows=1024):
    """logits, labels: (B, S, C>=3). Returns scalar f32 loss."""
    del masks  # unused by the reference forward
    B, S, C = logits.shape
    assert C >= 3
    n = B * S

    # Tile geometry: lane-dense (3, R, 128) layout, blocks of TR rows (TR % 8 == 0).
    rows = -(-n // _LANES)
    rows8 = -(-rows // _SUBLANES) * _SUBLANES
    tr = min(int(block_rows), rows8)
    tr = max(_SUBLANES, (tr // _SUBLANES) * _SUBLANES)
    grid_r = -(-rows // tr)
    rows_pad = grid_r * tr
    n_pad = rows_pad * _LANES

    # Channel-major relayout + pad, written so XLA can fuse it into one copy.
    # Padding logits with -1e9 and labels with 0 makes padded elements
    # contribute exactly 0 to both loss terms -> no mask array needed.
    # TODO(synk): if the producer can emit channel-major (3, N) directly, this
    # relayout pass (the only remaining extra HBM pass) disappears entirely.
    def to_cm(a, pad_value):
        a = a[:, :, :3].astype(jnp.float32).reshape(n, 3).T        # (3, N)
        a = jnp.pad(a, ((0, 0), (0, n_pad - n)), constant_values=pad_value)
        return a.reshape(3, rows_pad, _LANES)

    x = to_cm(logits, -1e9)
    y = to_cm(labels, 0.0)

    kernel = functools.partial(
        _focal_bce_kernel,
        alpha=float(alpha), gamma=float(gamma),
        s0=float(weight[0]) / float(n),           # w0 / N    (BCE mean)
        s1=float(weight[1]) / (2.0 * float(n)),   # w1 / (2N) (focal mean)
    )

    block_bytes = 3 * tr * _LANES * 4
    vmem_limit = 2 * 2 * block_bytes + tr * _LANES * 4 + (2 << 20)

    out = pl.pallas_call(
        kernel,
        out_shape=jax.ShapeDtypeStruct((1, 1), jnp.float32),
        grid_spec=pltpu.PrefetchScalarGridSpec(
            num_scalar_prefetch=0,
            grid=(grid_r,),
            in_specs=[pl.BlockSpec((3, tr, _LANES), lambda i: (0, i, 0)),
                      pl.BlockSpec((3, tr, _LANES), lambda i: (0, i, 0))],
            out_specs=pl.BlockSpec((1, 1), lambda i: (0, 0),
                                   memory_space=pltpu.MemorySpace.SMEM),
            scratch_shapes=[pltpu.VMEM((tr, _LANES), jnp.float32)],
        ),
        compiler_params=pltpu.CompilerParams(
            dimension_semantics=("arbitrary",),
            vmem_limit_bytes=int(vmem_limit)),
        # TODO(synk): on v7x (2 TensorCores) add a leading "parallel" grid axis
        # with per-core partial sums combined in the wrapper for up to ~2x.
    )(x, y)
    return out[0, 0]


def _reference(logits, labels, alpha, gamma, weight):
    # pure-JAX reference of the PyTorch module, for verification
    x0 = logits[:, :, 0].astype(jnp.float32)
    y0 = labels[:, :, 0].astype(jnp.float32)
    bce = jnp.maximum(x0, 0) - x0 * y0 + jnp.log1p(jnp.exp(-jnp.abs(x0)))
    bce_mean = jnp.mean(bce)

    xf = logits[:, :, 1:3].astype(jnp.float32)
    yf = labels[:, :, 1:3].astype(jnp.float32)
    ce = jnp.maximum(xf, 0) - xf * yf + jnp.log1p(jnp.exp(-jnp.abs(xf)))
    p = jax.nn.sigmoid(xf)
    p_t = p * yf + (1 - p) * (1 - yf)
    fl = ce * (1 - p_t) ** gamma
    if alpha >= 0:
        fl = (alpha * yf + (1 - alpha) * (1 - yf)) * fl
    return weight[0] * bce_mean + weight[1] * jnp.mean(fl)


if __name__ == "__main__":
    key = jax.random.PRNGKey(0)
    k1, k2 = jax.random.split(key, 2)

    B, S, C = 2, 1000, 3          # forward implies (B, S, 3)
    alpha, gamma = 0.25, 2.0
    weight = (1.0, 1.0)

    logits = jax.random.normal(k1, (B, S, C), dtype=jnp.float32)
    labels = jax.random.bernoulli(k2, 0.5, (B, S, C)).astype(jnp.float32)
    masks = jnp.ones((B, S), dtype=jnp.float32)  # unused, mirrors the API

    ref = _reference(logits, labels, alpha, gamma, weight)

    # small blocks: exercises the multi-step grid, accumulator and ragged tail
    loss_grid = focal_bce_loss(logits, labels, masks, alpha=alpha, gamma=gamma,
                               weight=weight, block_rows=8)
    # default (large-block) configuration
    loss_default = focal_bce_loss(logits, labels, masks, alpha=alpha,
                                  gamma=gamma, weight=weight)
    loss_grid, loss_default = jax.block_until_ready((loss_grid, loss_default))

    assert jnp.allclose(loss_grid, ref, rtol=1e-5, atol=1e-6), (loss_grid, ref)
    assert jnp.allclose(loss_default, ref, rtol=1e-5, atol=1e-6), (loss_default, ref)

    print("KERNEL_OK")
</pallas_src>

<mosaic_0001>
module attributes {stable_mosaic.version = 11 : i64} {
  func.func @_focal_bce_kernel(%arg0: i32, %arg1: memref<3x8x128xf32, #tpu.memory_space<vmem>>, %arg2: memref<3x8x128xf32, #tpu.memory_space<vmem>>, %arg3: memref<1x1xf32, #tpu.memory_space<smem>>, %arg4: memref<8x128xf32, #tpu.memory_space<vmem>>) attributes {dimension_semantics = [#tpu.dimension_semantics<arbitrary>], iteration_bounds = array<i64: 2>, scalar_prefetch = 0 : i64, scratch_operands = 1 : i64, tpu.core_type = #tpu.core_type<tc>, window_params = [{transform_indices = @transform_0, window_bounds = array<i64: 3, 8, 128>}, {transform_indices = @transform_1, window_bounds = array<i64: 3, 8, 128>}, {transform_indices = @transform_2, window_bounds = array<i64: 1, 1>}]} {
    %c0_i32 = arith.constant 0 : i32
    %0 = arith.cmpi eq, %arg0, %c0_i32 : i32
    %1 = arith.extui %0 : i1 to i32
    %c0_i32_0 = arith.constant 0 : i32
    %2 = arith.cmpi ne, %1, %c0_i32_0 : i32
    scf.if %2 {
      %cst_23 = arith.constant 0.000000e+00 : f32
      %64 = vector.broadcast %cst_23 : f32 to vector<8x128xf32>
      %c0_24 = arith.constant 0 : index
      %c0_25 = arith.constant 0 : index
      %65 = vector.load %arg4[%c0_24, %c0_25] : memref<8x128xf32, #tpu.memory_space<vmem>>, vector<8x128xf32>
      tpu.vector_store %arg4[%c0_24, %c0_25], %64 {strides = array<i32>} : memref<8x128xf32, #tpu.memory_space<vmem>>, vector<8x128xf32>,
    } else {
    }
    %c0 = arith.constant 0 : index
    %c0_1 = arith.constant 0 : index
    %c0_2 = arith.constant 0 : index
    %3 = vector.load %arg1[%c0, %c0_1, %c0_2] : memref<3x8x128xf32, #tpu.memory_space<vmem>>, vector<3x8x128xf32>
    %c0_3 = arith.constant 0 : index
    %c0_4 = arith.constant 0 : index
    %c0_5 = arith.constant 0 : index
    %4 = vector.load %arg2[%c0_3, %c0_4, %c0_5] : memref<3x8x128xf32, #tpu.memory_space<vmem>>, vector<3x8x128xf32>
    %5 = math.absf %3 : vector<3x8x128xf32>
    %cst = arith.constant 0.000000e+00 : f32
    %6 = vector.broadcast %cst : f32 to vector<3x8x128xf32>
    %7 = arith.subf %6, %5 : vector<3x8x128xf32>
    %8 = math.exp %7 : vector<3x8x128xf32>
    %cst_6 = arith.constant 0.000000e+00 : f32
    %9 = vector.broadcast %cst_6 : f32 to vector<3x8x128xf32>
    %10 = arith.maximumf %3, %9 : vector<3x8x128xf32>
    %11 = arith.mulf %3, %4 : vector<3x8x128xf32>
    %12 = arith.subf %10, %11 : vector<3x8x128xf32>
    %13 = math.log1p %8 : vector<3x8x128xf32>
    %14 = arith.addf %12, %13 : vector<3x8x128xf32>
    %15 = vector.extract_strided_slice %14 {offsets = [0, 0, 0], sizes = [1, 8, 128], strides = [1, 1, 1]} : vector<3x8x128xf32> to vector<1x8x128xf32>
    %16 = vector.shape_cast %15 : vector<1x8x128xf32> to vector<8x128xf32>
    %cst_7 = arith.constant 5.000000e-04 : f32
    %17 = vector.broadcast %cst_7 : f32 to vector<8x128xf32>
    %18 = arith.mulf %16, %17 : vector<8x128xf32>
    %19 = vector.extract_strided_slice %3 {offsets = [1, 0, 0], sizes = [2, 8, 128], strides = [1, 1, 1]} : vector<3x8x128xf32> to vector<2x8x128xf32>
    %20 = vector.extract_strided_slice %4 {offsets = [1, 0, 0], sizes = [2, 8, 128], strides = [1, 1, 1]} : vector<3x8x128xf32> to vector<2x8x128xf32>
    %21 = vector.extract_strided_slice %8 {offsets = [1, 0, 0], sizes = [2, 8, 128], strides = [1, 1, 1]} : vector<3x8x128xf32> to vector<2x8x128xf32>
    %22 = vector.extract_strided_slice %14 {offsets = [1, 0, 0], sizes = [2, 8, 128], strides = [1, 1, 1]} : vector<3x8x128xf32> to vector<2x8x128xf32>
    %cst_8 = arith.constant 1.000000e+00 : f32
    %23 = vector.broadcast %cst_8 : f32 to vector<2x8x128xf32>
    %24 = arith.addf %23, %21 : vector<2x8x128xf32>
    %cst_9 = arith.constant 1.000000e+00 : f32
    %25 = vector.broadcast %cst_9 : f32 to vector<2x8x128xf32>
    %26 = arith.divf %25, %24 : vector<2x8x128xf32>
    %cst_10 = arith.constant 0.000000e+00 : f32
    %27 = vector.broadcast %cst_10 : f32 to vector<2x8x128xf32>
    %28 = arith.cmpf oge, %19, %27 : vector<2x8x128xf32>
    %29 = arith.mulf %21, %26 : vector<2x8x128xf32>
    %30 = arith.select %28, %26, %29 : vector<2x8x128xi1>, vector<2x8x128xf32>
    %31 = arith.mulf %30, %20 : vector<2x8x128xf32>
    %cst_11 = arith.constant 1.000000e+00 : f32
    %32 = vector.broadcast %cst_11 : f32 to vector<2x8x128xf32>
    %33 = arith.subf %32, %30 : vector<2x8x128xf32>
    %cst_12 = arith.constant 1.000000e+00 : f32
    %34 = vector.broadcast %cst_12 : f32 to vector<2x8x128xf32>
    %35 = arith.subf %34, %20 : vector<2x8x128xf32>
    %36 = arith.mulf %33, %35 : vector<2x8x128xf32>
    %37 = arith.addf %31, %36 : vector<2x8x128xf32>
    %cst_13 = arith.constant 1.000000e+00 : f32
    %38 = vector.broadcast %cst_13 : f32 to vector<2x8x128xf32>
    %39 = arith.subf %38, %37 : vector<2x8x128xf32>
    %40 = arith.mulf %39, %39 : vector<2x8x128xf32>
    %41 = arith.mulf %22, %40 : vector<2x8x128xf32>
    %cst_14 = arith.constant 2.500000e-01 : f32
    %42 = vector.broadcast %cst_14 : f32 to vector<2x8x128xf32>
    %43 = arith.mulf %42, %20 : vector<2x8x128xf32>
    %cst_15 = arith.constant 1.000000e+00 : f32
    %44 = vector.broadcast %cst_15 : f32 to vector<2x8x128xf32>
    %45 = arith.subf %44, %20 : vector<2x8x128xf32>
    %cst_16 = arith.constant 7.500000e-01 : f32
    %46 = vector.broadcast %cst_16 : f32 to vector<2x8x128xf32>
    %47 = arith.mulf %46, %45 : vector<2x8x128xf32>
    %48 = arith.addf %43, %47 : vector<2x8x128xf32>
    %49 = arith.mulf %48, %41 : vector<2x8x128xf32>
    %50 = vector.extract_strided_slice %49 {offsets = [0, 0, 0], sizes = [1, 8, 128], strides = [1, 1, 1]} : vector<2x8x128xf32> to vector<1x8x128xf32>
    %51 = vector.shape_cast %50 : vector<1x8x128xf32> to vector<8x128xf32>
    %52 = vector.extract_strided_slice %49 {offsets = [1, 0, 0], sizes = [1, 8, 128], strides = [1, 1, 1]} : vector<2x8x128xf32> to vector<1x8x128xf32>
    %53 = vector.shape_cast %52 : vector<1x8x128xf32> to vector<8x128xf32>
    %54 = arith.addf %51, %53 : vector<8x128xf32>
    %cst_17 = arith.constant 2.500000e-04 : f32
    %55 = vector.broadcast %cst_17 : f32 to vector<8x128xf32>
    %56 = arith.mulf %54, %55 : vector<8x128xf32>
    %c0_18 = arith.constant 0 : index
    %c0_19 = arith.constant 0 : index
    %57 = vector.load %arg4[%c0_18, %c0_19] : memref<8x128xf32, #tpu.memory_space<vmem>>, vector<8x128xf32>
    %58 = arith.addf %18, %56 : vector<8x128xf32>
    %59 = arith.addf %57, %58 : vector<8x128xf32>
    %c0_20 = arith.constant 0 : index
    %c0_21 = arith.constant 0 : index
    %60 = vector.load %arg4[%c0_20, %c0_21] : memref<8x128xf32, #tpu.memory_space<vmem>>, vector<8x128xf32>
    tpu.vector_store %arg4[%c0_20, %c0_21], %59 {strides = array<i32>} : memref<8x128xf32, #tpu.memory_space<vmem>>, vector<8x128xf32>,
    %c1_i32 = arith.constant 1 : i32
    %61 = arith.cmpi eq, %arg0, %c1_i32 : i32
    %62 = arith.extui %61 : i1 to i32
    %c0_i32_22 = arith.constant 0 : i32
    %63 = arith.cmpi ne, %62, %c0_i32_22 : i32
    scf.if %63 {
      %c0_23 = arith.constant 0 : index
      %c0_24 = arith.constant 0 : index
      %64 = vector.load %arg4[%c0_23, %c0_24] : memref<8x128xf32, #tpu.memory_space<vmem>>, vector<8x128xf32>
      %65 = vector.shape_cast %64 : vector<8x128xf32> to vector<1x8x128xf32>
      %cst_25 = arith.constant dense<0.000000e+00> : vector<1xf32>
      %66 = vector.multi_reduction <add>, %65, %cst_25 [1, 2] : vector<1x8x128xf32> to vector<1xf32>
      %67 = vector.shape_cast %66 : vector<1xf32> to vector<1x1x1xf32>
      %68 = vector.extract %67[0, 0, 0] : f32 from vector<1x1x1xf32>
      %c0_26 = arith.constant 0 : index
      %c0_27 = arith.constant 0 : index
      %69 = memref.load %arg3[%c0_26, %c0_27] : memref<1x1xf32, #tpu.memory_space<smem>>
      memref.store %68, %arg3[%c0_26, %c0_27] : memref<1x1xf32, #tpu.memory_space<smem>>
    } else {
    }
    return
  }
  func.func @transform_0(%arg0: i32) -> (i32, i32, i32) {
    %c0_i32 = arith.constant 0 : i32
    %c0_i32_0 = arith.constant 0 : i32
    %c0_i32_1 = arith.constant 0 : i32
    return %c0_i32, %arg0, %c0_i32_0 : i32, i32, i32
  }
  func.func @transform_1(%arg0: i32) -> (i32, i32, i32) {
    %c0_i32 = arith.constant 0 : i32
    %c0_i32_0 = arith.constant 0 : i32
    %c0_i32_1 = arith.constant 0 : i32
    return %c0_i32, %arg0, %c0_i32_0 : i32, i32, i32
  }
  func.func @transform_2(%arg0: i32) -> (i32, i32) {
    %c0_i32 = arith.constant 0 : i32
    %c0_i32_0 = arith.constant 0 : i32
    %c0_i32_1 = arith.constant 0 : i32
    return %c0_i32, %c0_i32_0 : i32, i32
  }
}

</mosaic_0001>

<llo_original>
// kernel: tpu_custom_call.1
$region0: #{tpu_custom_call.1}
  #allocation0 [shape = 'u32[]', space=smem, size = 0x4, offset = 0x4, fixed_abs, tag = 'smem constant byte address 0x4 - core index']
  #allocation1 [shape = 'u32[72,128]{1,0:T(1,128)}', space=vmem, size = 0x9000, scoped, tag = 'internal scratch']
  #allocation2 [shape = 'f32[8,128]{1,0:T(8,128)}', space=vmem, size = 0x1000, scoped, tag = 'scratch operand']
  %s0 = inlined_call_operand.hbm [shape: f32[3,16,128], index: 0, kind: input, shape index: {}]
  %s1 = inlined_call_operand.hbm [shape: f32[3,16,128], index: 1, kind: input, shape index: {}]
  %s2 = inlined_call_operand.hbm [shape: f32[1,1], index: 2, kind: output, shape index: {}]
  %s3 = sld [smem:[#allocation0]]
  $region57: #{tpu_custom_call.1} parent=0
    _
  %s5 = ssub.s32 1, %s3
  %s6 = scalar_select 0, %s5, %s3
  $region1: #{tpu_custom_call.1} parent=0
    #allocation3 [shape = 'u8[24576]{0}', space=vmem, size = 0x6000, scoped, tag = 'input window, operand 0']
    #allocation4 [shape = 's32[2]{0}', space=sflag, size = 0x8, scoped, tag = 'scoped memory for tpu_custom_call.1']
    #allocation5 [shape = 's32[2]{0}', space=sflag, size = 0x8, scoped, tag = 'scoped memory for tpu_custom_call.1']
    #allocation6 [shape = 'u8[24576]{0}', space=vmem, size = 0x6000, scoped, tag = 'input window, operand 1']
    #allocation7 [shape = 's32[2]{0}', space=sflag, size = 0x8, scoped, tag = 'scoped memory for tpu_custom_call.1']
    #allocation8 [shape = 'u8[512]{0}', space=smem, size = 0x200, scoped, tag = 'output window, operand 0, single buffered']
    %7 = vsyncpa [#allocation4], 0
    %s8 = scalar_lea.sflag [#allocation4], 1
    %9 = vsyncpa %s8, 0
    %10 = vsyncpa [#allocation7], 0
    %s11 = scalar_lea.sflag [#allocation7], 1
    %12 = vsyncpa %s11, 0
    %13 = vsyncpa [#allocation5], 0
    loop: start=0, step=1, limit=4
    $region2: #{tpu_custom_call.1} parent=1 // loop_pre_header
      _
    $region3: #{tpu_custom_call.1} parent=1 // loop_header
      %s15 = sphi 0, %s19
      %p16 = scmp.ge.s32.totalorder %s15, 4
      %s25 = sphi 0, %s27
      %s28 = sphi 0, %s25
      %s29 = sphi 0, %s28
      %s45 = sphi 0, %s29
      %s51 = sphi 0, %s53
      %s54 = sphi 0, %s51
      %s55 = sphi 0, %s54
      %s71 = sphi 0, %s55
      %s75 = sphi 0, %s75
      %s77 = sphi 0, %s75
      %s78 = sphi 0, %s77
      %s92 = sphi 0, %s78
    $region4: #{tpu_custom_call.1} parent=1 // loop_header_branch
      %18 = sbr.rel (%p16) target = $region8
    $region5: #{tpu_custom_call.1} parent=1 // loop_body
      %s20 = ssub.s32 %s15, 1
      %s21 = ssub.s32 %s15, 2
      %s22 = sadd.s32 %s15, 1
      %s23 = ssub.s32 %s15, %s22
      %p24 = scmp.eq.s32.totalorder %s23, 0
      %s26 = sadd.s32 %s25, 1
      %s27 = scalar_select %p24, %s25, %s26
      %p30 = pneg %p24
      %p31 = scmp.eq.s32.totalorder %s15, 1
      %p32 = por %p30, %p31
      %p33 = scmp.ne.s32.totalorder %s25, %s28
      %p34 = scmp.eq.s32.totalorder %s15, 0
      %p35 = por %p33, %p34
      %p36 = scmp.ne.s32.totalorder %s25, %s28
      %p37 = scmp.eq.s32.totalorder %s20, 1
      %p38 = por %p36, %p37
      %p39 = scmp.ne.s32.totalorder %s28, %s29
      %p40 = scmp.eq.s32.totalorder %s20, 0
      %p41 = por %p39, %p40
      %p42 = scmp.ne.s32.totalorder %s28, %s29
      %p43 = scmp.eq.s32.totalorder %s21, 1
      %p44 = por %p42, %p43
      %p46 = scmp.ne.s32.totalorder %s29, %s45
      %p47 = scmp.eq.s32.totalorder %s21, 0
      %p48 = por %p46, %p47
      %s49 = ssub.s32 %s15, %s22
      %p50 = scmp.eq.s32.totalorder %s49, 0
      %s52 = sadd.s32 %s51, 1
      %s53 = scalar_select %p50, %s51, %s52
      %p56 = pneg %p50
      %p57 = scmp.eq.s32.totalorder %s15, 1
      %p58 = por %p56, %p57
      %p59 = scmp.ne.s32.totalorder %s51, %s54
      %p60 = scmp.eq.s32.totalorder %s15, 0
      %p61 = por %p59, %p60
      %p62 = scmp.ne.s32.totalorder %s51, %s54
      %p63 = scmp.eq.s32.totalorder %s20, 1
      %p64 = por %p62, %p63
      %p65 = scmp.ne.s32.totalorder %s54, %s55
      %p66 = scmp.eq.s32.totalorder %s20, 0
      %p67 = por %p65, %p66
      %p68 = scmp.ne.s32.totalorder %s54, %s55
      %p69 = scmp.eq.s32.totalorder %s21, 1
      %p70 = por %p68, %p69
      %p72 = scmp.ne.s32.totalorder %s55, %s71
      %p73 = scmp.eq.s32.totalorder %s21, 0
      %p74 = por %p72, %p73
      %s76 = sadd.s32 %s75, 1
      %p79 = scmp.eq.s32.totalorder %s15, 1
      %p80 = scmp.ne.s32.totalorder %s75, %s77
      %p81 = scmp.eq.s32.totalorder %s15, 0
      %p82 = por %p80, %p81
      %p83 = scmp.ne.s32.totalorder %s75, %s77
      %p84 = scmp.eq.s32.totalorder %s20, 1
      %p85 = por %p83, %p84
      %p86 = scmp.ne.s32.totalorder %s77, %s78
      %p87 = scmp.eq.s32.totalorder %s20, 0
      %p88 = por %p86, %p87
      %p89 = scmp.ne.s32.totalorder %s77, %s78
      %p90 = scmp.eq.s32.totalorder %s21, 1
      %p91 = por %p89, %p90
      %p93 = scmp.ne.s32.totalorder %s78, %s92
      %p94 = scmp.eq.s32.totalorder %s21, 0
      %p95 = por %p93, %p94
      %p96 = scmp.le.s32.totalorder 1, %s15
      %p97 = scmp.lt.s32.totalorder %s15, 3
      %p98 = pnand %p96, %p97
      %p99 = pneg %p98
      // Predicated region
      $region9: #{tpu_custom_call.1} parent=5 // pred_check
        _
      $region10: #{tpu_custom_call.1} parent=5 // pred_check_branch
        %101 = sbr.rel (%p98) target = $region12
      $region11: #{tpu_custom_call.1} parent=5 // pred_region
        %s102 = ssub.s32 %s15, 1
      $region12: #{tpu_custom_call.1} parent=5 // pred_fallthru
        _
      %p103 = scmp.lt.s32.totalorder %s15, 2
      // Predicated region
      $region13: #{tpu_custom_call.1} parent=5 // pred_check
        %p104 = pneg %p103
      $region14: #{tpu_custom_call.1} parent=5 // pred_check_branch
        %106 = sbr.rel (%p104) target = $region16
      $region15: #{tpu_custom_call.1} parent=5 // pred_region
        // Predicated region
        $region17: #{tpu_custom_call.1} parent=15 // pred_check
          %p107 = pneg %p35
        $region18: #{tpu_custom_call.1} parent=15 // pred_check_branch
          %109 = sbr.rel (%p107) target = $region20
        $region19: #{tpu_custom_call.1} parent=15 // pred_region
          %s110 = sand.u32 %s25, 1
          %s111 = scalar_lea.sflag [#allocation4], %s110
          %s112 = sand.u32 %s25, 1
          %s113 = smul.addr %s112, 24
          %s114 = scalar_lea.vmem [#allocation3], %s113
          %116 = vsyncadd %s111, 0
          %s117 = smul.addr %s15, 8
          %s118 = scalar_lea.hbm %s0, %s117
          %s119 = sshll.u32 %s118, 4
          %s120 = int_to_ptr.hbm [resolvable:$true] %s119
          %s121 = sshll.u32 %s114, 4
          %s122 = int_to_ptr.vmem [resolvable:$true] %s121
          %127 = dma.hbm_to_vmem [thread:$0]  %s120, 384, %s122, %s111, 256, 128, 8
        $region20: #{tpu_custom_call.1} parent=15 // pred_fallthru
          _
        // Predicated region
        $region21: #{tpu_custom_call.1} parent=15 // pred_check
          %p128 = pneg %p61
        $region22: #{tpu_custom_call.1} parent=15 // pred_check_branch
          %130 = sbr.rel (%p128) target = $region24
        $region23: #{tpu_custom_call.1} parent=15 // pred_region
          %s131 = sand.u32 %s51, 1
          %s132 = scalar_lea.sflag [#allocation7], %s131
          %s133 = sand.u32 %s51, 1
          %s134 = smul.addr %s133, 24
          %s135 = scalar_lea.vmem [#allocation6], %s134
          %137 = vsyncadd %s132, 0
          %s138 = smul.addr %s15, 8
          %s139 = scalar_lea.hbm %s1, %s138
          %s140 = sshll.u32 %s139, 4
          %s141 = int_to_ptr.hbm [resolvable:$true] %s140
          %s142 = sshll.u32 %s135, 4
          %s143 = int_to_ptr.vmem [resolvable:$true] %s142
          %148 = dma.hbm_to_vmem [thread:$0]  %s141, 384, %s143, %s132, 256, 128, 8
        $region24: #{tpu_custom_call.1} parent=15 // pred_fallthru
          _
      $region16: #{tpu_custom_call.1} parent=5 // pred_fallthru
        _
      %p149 = scmp.le.s32.totalorder 1, %s15
      %p150 = scmp.lt.s32.totalorder %s15, 3
      %p151 = pnand %p149, %p150
      %p152 = pneg %p151
      // Predicated region
      $region25: #{tpu_custom_call.1} parent=5 // pred_check
        _
      $region26: #{tpu_custom_call.1} parent=5 // pred_check_branch
        %154 = sbr.rel (%p151) target = $region28
      $region27: #{tpu_custom_call.1} parent=5 // pred_region
        %s155 = ssub.s32 %s15, 1
        %s156 = sand.u32 %s28, 1
        %s157 = scalar_lea.sflag [#allocation4], %s156
        %s158 = sand.u32 %s28, 1
        %s159 = smul.addr %s158, 24
        %s160 = scalar_lea.vmem [#allocation3], %s159
        // Predicated region
        $region29: #{tpu_custom_call.1} parent=27 // pred_check
          %p161 = pneg %p41
        $region30: #{tpu_custom_call.1} parent=27 // pred_check_branch
          %163 = sbr.rel (%p161) target = $region32
        $region31: #{tpu_custom_call.1} parent=27 // pred_region
          %165 = dma.done %s157, 384
        $region32: #{tpu_custom_call.1} parent=27 // pred_fallthru
          _
        %s166 = sand.u32 %s54, 1
        %s167 = scalar_lea.sflag [#allocation7], %s166
        %s168 = sand.u32 %s54, 1
        %s169 = smul.addr %s168, 24
        %s170 = scalar_lea.vmem [#allocation6], %s169
        // Predicated region
        $region33: #{tpu_custom_call.1} parent=27 // pred_check
          %p171 = pneg %p67
        $region34: #{tpu_custom_call.1} parent=27 // pred_check_branch
          %173 = sbr.rel (%p171) target = $region36
        $region35: #{tpu_custom_call.1} parent=27 // pred_region
          %175 = dma.done %s167, 384
        $region36: #{tpu_custom_call.1} parent=27 // pred_fallthru
          _
        %s176 = sand.u32 %s28, 1
        %s177 = scalar_lea.sflag [#allocation4], %s176
        %s178 = sand.u32 %s28, 1
        %s179 = smul.addr %s178, 24
        %s180 = scalar_lea.vmem [#allocation3], %s179
        %p181 = pneg %p41
        %p182 = pneg %p38
        %s183 = sand.u32 %s54, 1
        %s184 = scalar_lea.sflag [#allocation7], %s183
        %s185 = sand.u32 %s54, 1
        %s186 = smul.addr %s185, 24
        %s187 = scalar_lea.vmem [#allocation6], %s186
        %p188 = pneg %p67
        %p189 = pneg %p64
        %p190 = pneg %p88
        %p191 = pneg %p85
        %p192 = scmp.eq.s32.totalorder %s20, 0
        // Predicated region
        $region37: #{tpu_custom_call.1} parent=27 // pred_check
          %p193 = pneg %p192
        $region38: #{tpu_custom_call.1} parent=27 // pred_check_branch
          %195 = sbr.rel (%p193) target = $region40
        $region39: #{tpu_custom_call.1} parent=27 // pred_region
          %196 = vst [vmem:[#allocation2] sm:$0xff] 0.0
        $region40: #{tpu_custom_call.1} parent=27 // pred_fallthru
          _
        %v197 = vld [vmem:[%s160] sm:$0xff]
        %v198 = vld [vmem:[%s160 + $0x8] sm:$0xff]
        %v199 = vld [vmem:[%s160 + $0x10] sm:$0xff]
        %v200 = vld [vmem:[%s170] sm:$0xff]
        %v201 = vld [vmem:[%s170 + $0x8] sm:$0xff]
        %v202 = vld [vmem:[%s170 + $0x10] sm:$0xff]
        %v203 = vand.u32 2147483647, %v197
        %v204 = vand.u32 2147483647, %v198
        %v205 = vand.u32 2147483647, %v199
        %v206 = vsub.f32 0.0, %v203
        %v207 = vsub.f32 0.0, %v204
        %v208 = vsub.f32 0.0, %v205
        %v209 = vmul.f32 %v206, 1.442695
        %v210 = vpow.pop %v209
        %v211 = vmul.f32 %v207, 1.442695
        %v212 = vpow.pop %v211
        %v213 = vmul.f32 %v208, 1.442695
        %v214 = vpow.pop %v213
        %v215 = vmax.f32 %v197, 0.0
        %v216 = vmax.f32 %v198, 0.0
        %v217 = vmax.f32 %v199, 0.0
        %v218 = vmul.f32 %v197, %v200
        %v219 = vmul.f32 %v198, %v201
        %v220 = vmul.f32 %v199, %v202
        %v221 = vsub.f32 %v215, %v218
        %v222 = vsub.f32 %v216, %v219
        %v223 = vsub.f32 %v217, %v220
        %v224 = vadd.f32 %v210, 1.0
        %v225 = vlog2.pop %v224
        %v226 = vmul.f32 %v225, 0.6931472
        %v227 = vmul.f32 -0.5, %v210
        %v228 = vadd.f32 %v227, 1.0
        %v229 = vmul.f32 %v228, %v210
        %v230 = vand.u32 2147483647, %v210
        %vm231 = vcmp.lt.f32.partialorder %v230, 0.0004427343
        %v232 = vsel %vm231, %v229, %v226
        %v233 = vadd.f32 %v212, 1.0
        %v234 = vlog2.pop %v233
        %v235 = vmul.f32 %v234, 0.6931472
        %v236 = vmul.f32 -0.5, %v212
        %v237 = vadd.f32 %v236, 1.0
        %v238 = vmul.f32 %v237, %v212
        %v239 = vand.u32 2147483647, %v212
        %vm240 = vcmp.lt.f32.partialorder %v239, 0.0004427343
        %v241 = vsel %vm240, %v238, %v235
        %v242 = vadd.f32 %v214, 1.0
        %v243 = vlog2.pop %v242
        %v244 = vmul.f32 %v243, 0.6931472
        %v245 = vmul.f32 -0.5, %v214
        %v246 = vadd.f32 %v245, 1.0
        %v247 = vmul.f32 %v246, %v214
        %v248 = vand.u32 2147483647, %v214
        %vm249 = vcmp.lt.f32.partialorder %v248, 0.0004427343
        %v250 = vsel %vm249, %v247, %v244
        %v251 = vadd.f32 %v221, %v232
        %v252 = vadd.f32 %v222, %v241
        %v253 = vadd.f32 %v223, %v250
        %v254 = vmul.f32 %v251, 0.0005
        %v255 = vadd.f32 %v212, 1.0
        %v256 = vadd.f32 %v214, 1.0
        %v257 = vrcp.pop %v255
        %v258 = vmul.f32 %v255, %v257
        %v259 = vsub.f32 1.0, %v258
        %v260 = vmul.f32 %v257, %v259
        %v261 = vadd.f32 %v257, %v260
        %vm262 = vweird.f32 %v255
        %vm263 = vweird.f32 %v257
        %vm264 = vmor %vm262, %vm263
        %v265 = vsel %vm264, %v257, %v261
        %v266 = vand.u32 2147483647, %v255
        %vm267 = vcmp.eq.f32.partialorder %v266, 8.507059e+37
        %v268 = vand.u32 %v255, 2147483648
        %v269 = vor.u32 1.1754944e-38, %v268
        %v270 = vsel %vm267, %v269, %v265
        %v271 = vmul.f32 1.0, %v270
        %v272 = vrcp.pop %v256
        %v273 = vmul.f32 %v256, %v272
        %v274 = vsub.f32 1.0, %v273
        %v275 = vmul.f32 %v272, %v274
        %v276 = vadd.f32 %v272, %v275
        %vm277 = vweird.f32 %v256
        %vm278 = vweird.f32 %v272
        %vm279 = vmor %vm277, %vm278
        %v280 = vsel %vm279, %v272, %v276
        %v281 = vand.u32 2147483647, %v256
        %vm282 = vcmp.eq.f32.partialorder %v281, 8.507059e+37
        %v283 = vand.u32 %v256, 2147483648
        %v284 = vor.u32 1.1754944e-38, %v283
        %v285 = vsel %vm282, %v284, %v280
        %v286 = vmul.f32 1.0, %v285
        %vm287 = vcmp.ge.f32.partialorder %v198, 0.0
        %vm288 = vcmp.ge.f32.partialorder %v199, 0.0
        %v289 = vmul.f32 %v212, %v271
        %v290 = vmul.f32 %v214, %v286
        %v291 = vsel %vm287, %v271, %v289
        %v292 = vsel %vm288, %v286, %v290
        %v293 = vmul.f32 %v291, %v201
        %v294 = vmul.f32 %v292, %v202
        %v295 = vsub.f32 1.0, %v291
        %v296 = vsub.f32 1.0, %v292
        %v297 = vsub.f32 1.0, %v201
        %v298 = vsub.f32 1.0, %v202
        %v299 = vmul.f32 %v295, %v297
        %v300 = vmul.f32 %v296, %v298
        %v301 = vadd.f32 %v293, %v299
        %v302 = vadd.f32 %v294, %v300
        %v303 = vsub.f32 1.0, %v301
        %v304 = vsub.f32 1.0, %v302
        %v305 = vmul.f32 %v303, %v303
        %v306 = vmul.f32 %v304, %v304
        %v307 = vmul.f32 %v252, %v305
        %v308 = vmul.f32 %v253, %v306
        %v309 = vmul.f32 %v201, 0.25
        %v310 = vmul.f32 %v202, 0.25
        %v311 = vmul.f32 %v297, 0.75
        %v312 = vmul.f32 %v298, 0.75
        %v313 = vadd.f32 %v309, %v311
        %v314 = vadd.f32 %v310, %v312
        %v315 = vmul.f32 %v313, %v307
        %v316 = vmul.f32 %v314, %v308
        %v317 = vadd.f32 %v315, %v316
        %v318 = vmul.f32 %v317, 0.00025
        %v319 = vld [vmem:[#allocation2] sm:$0xff]
        %v320 = vadd.f32 %v254, %v318
        %v321 = vadd.f32 %v319, %v320
        %322 = vst [vmem:[#allocation2] sm:$0xff] %v321
        %p323 = scmp.eq.s32.totalorder %s20, 1
        // Predicated region
        $region41: #{tpu_custom_call.1} parent=27 // pred_check
          %p324 = pneg %p323
        $region42: #{tpu_custom_call.1} parent=27 // pred_check_branch
          %326 = sbr.rel (%p324) target = $region44
        $region43: #{tpu_custom_call.1} parent=27 // pred_region
          %v327 = vld [vmem:[#allocation2] sm:$0xff]
          %328 = vadd.xlane.f32.xlu0 %v327
          %v329 = vpop.xlane.xlu0 %328
          %v330 = vrot.slane %v329, 4
          %v331 = vadd.f32 %v329, %v330
          %v332 = vrot.slane %v331, 2
          %v333 = vadd.f32 %v331, %v332
          %v334 = vrot.slane %v333, 1
          %v335 = vadd.f32 %v333, %v334
          %s336 = vtos %v335
          %s337 = scalar_lea.smem [#allocation8], 0
          %338 = sst [smem:[%s337]] %s336
        $region44: #{tpu_custom_call.1} parent=27 // pred_fallthru
          _
        // Predicated region
        $region45: #{tpu_custom_call.1} parent=27 // pred_check
          %p339 = pneg %p85
        $region46: #{tpu_custom_call.1} parent=27 // pred_check_branch
          %341 = sbr.rel (%p339) target = $region48
        $region47: #{tpu_custom_call.1} parent=27 // pred_region
          %343 = vsyncadd [#allocation5], 0
          %s345 = sshll.u32 %s2, 4
          %s346 = int_to_ptr.hbm [resolvable:$true] %s345
          %348 = dma.smem_to_hbm [#allocation8], 16, %s346, [#allocation5]
        $region48: #{tpu_custom_call.1} parent=27 // pred_fallthru
          _
        // Predicated region
        $region49: #{tpu_custom_call.1} parent=27 // pred_check
          %p349 = pneg %p85
        $region50: #{tpu_custom_call.1} parent=27 // pred_check_branch
          %351 = sbr.rel (%p349) target = $region52
        $region51: #{tpu_custom_call.1} parent=27 // pred_region
          %353 = dma.done [#allocation5], 16
        $region52: #{tpu_custom_call.1} parent=27 // pred_fallthru
          _
        %354 = sfence
      $region28: #{tpu_custom_call.1} parent=5 // pred_fallthru
        _
      %p355 = scmp.le.s32.totalorder 2, %s15
      // Predicated region
      $region53: #{tpu_custom_call.1} parent=5 // pred_check
        %p356 = pneg %p355
      $region54: #{tpu_custom_call.1} parent=5 // pred_check_branch
        %358 = sbr.rel (%p356) target = $region56
      $region55: #{tpu_custom_call.1} parent=5 // pred_region
        %s359 = ssub.s32 %s15, 2
      $region56: #{tpu_custom_call.1} parent=5 // pred_fallthru
        _
    $region6: #{tpu_custom_call.1} parent=1 // loop_footer
      %s19 = sadd.s32 1, %s15
    $region7: #{tpu_custom_call.1} parent=1 // loop_footer_branch
      %14 = sbr.rel target = $region3
    $region8: #{tpu_custom_call.1} parent=1 // loop_exit
      _
    %360 = vsyncpa [#allocation4], 1
    %s361 = scalar_lea.sflag [#allocation4], 1
    %362 = vsyncpa %s361, 1
    %363 = vsyncpa [#allocation7], 1
    %s364 = scalar_lea.sflag [#allocation7], 1
    %365 = vsyncpa %s364, 1
    %366 = vsyncpa [#allocation5], 1
    %s367 = scalar_lea.sflag [#allocation5], 1
    %368 = vsyncpa %s367, 1

</llo_original>
